<compile_context>
chip_gen: v5e
topology: v5e:2x2
jax: 0.10.0
libtpu: 0.0.40
codegen_flags: <defaults>
</compile_context>

<pallas_src>
import numpy as np
import jax
import jax.numpy as jnp
from jax import lax
from jax.experimental import pallas as pl
from jax.experimental.pallas import tpu as pltpu


def _round_up(v, m):
    return ((v + m - 1) // m) * m


def _vmem_capacity_bytes():
    """VMEM capacity per TensorCore; conservative fallback if the query is unavailable."""
    try:
        info = pltpu.get_tpu_info()
        cap = getattr(info, "vmem_capacity_bytes", None)
        if cap:
            return int(cap)
    except Exception:
        pass
    return 64 << 20  # v7x per-TC value — safe lower bound for v5e/v6e too.


def _choose_tiling(B, N, in_itemsize_sum, vmem_cap):
    """Pick (bt, nt): rows per block and reduction-axis tile, within a VMEM budget."""
    budget = min(vmem_cap // 8, 16 << 20)          # for double-buffered input blocks
    per_elem = 2 * in_itemsize_sum                 # x + t, x2 double buffering
    max_block_elems = max(budget // per_elem, 8 * 128)

    # Preferred path: whole rows in one block (single reduction step per row block).
    rows_fitting = max_block_elems // max(N, 1)
    if rows_fitting >= min(B, 8):
        if B < 8:
            bt = B                                 # block sublane dim == full array dim
        else:
            bt = int(max(8, min((rows_fitting // 8) * 8, 1024, _round_up(B, 8))))
        return bt, N

    # Large N: tile the reduction axis; keep sublanes filled and blocks ~budget-sized.
    bt = B if B < 8 else 8
    nt = max_block_elems // max(bt, 1)
    nt = int(max(128, (nt // 128) * 128))
    nt = min(nt, (N // 128) * 128 if N >= 128 else 128)
    return bt, nt


def _make_nss_kernel(n_total, nt, mask_cols):
    inv_n = 1.0 / n_total
    # NOTE: torch.std(ddof=1) gives NaN for N==1; this guard keeps the value finite
    # for that degenerate case (semantic divergence only when N == 1).
    inv_nm1 = 1.0 / max(n_total - 1, 1)

    def kernel(x_ref, t_ref, o_ref, sx_ref, sxx_ref, smx_ref, scnt_ref):
        k = pl.program_id(1)

        @pl.when(k == 0)
        def _():
            sx_ref[...] = jnp.zeros_like(sx_ref)
            sxx_ref[...] = jnp.zeros_like(sxx_ref)
            smx_ref[...] = jnp.zeros_like(smx_ref)
            scnt_ref[...] = jnp.zeros_like(scnt_ref)

        x = x_ref[...].astype(jnp.float32)
        t = t_ref[...]
        fix = t != 0

        if mask_cols:
            # Reduction-axis edge block: zero out the OOB/garbage columns.
            col = k * nt + lax.broadcasted_iota(jnp.int32, x.shape, 1)
            valid = col < n_total
            x = jnp.where(valid, x, 0.0)
            fix = jnp.logical_and(fix, valid)

        # Single-pass moments; the four reductions are independent (no serial chain).
        sx_ref[...] += jnp.sum(x, axis=-1, keepdims=True)
        sxx_ref[...] += jnp.sum(x * x, axis=-1, keepdims=True)
        smx_ref[...] += jnp.sum(jnp.where(fix, x, 0.0), axis=-1, keepdims=True)
        scnt_ref[...] += jnp.sum(jnp.where(fix, 1.0, 0.0), axis=-1, keepdims=True)

        @pl.when(k == pl.num_programs(1) - 1)
        def _():
            sum_x = sx_ref[...]
            mean = sum_x * inv_n                                   # (bt, 1)
            # var = (sum(x^2) - n*mean^2) / (n-1); f32 accumulation throughout.
            var = (sxx_ref[...] - mean * sum_x) * inv_nm1
            inv_std = lax.rsqrt(var)
            # sum over mask of (x - mean) = sum(x[mask]) - mean * count(mask)
            masked_c = smx_ref[...] - mean * scnt_ref[...]
            nss_rows = (-inv_n) * inv_std * masked_c               # (bt, 1)
            # Lane-dense (full 128-lane) unmasked store of the per-row NSS values.
            o_ref[...] = jnp.broadcast_to(nss_rows, o_ref.shape)

    return kernel


def my_norm_scan_sali(inp, tgt):
    """Pallas implementation of MyNormScanSali.forward (scalar loss)."""
    B = inp.shape[0]
    N = int(np.prod(inp.shape[1:]))

    # Flatten trailing dims; keep native dtypes (no wrapper upcast -> less HBM traffic).
    x = inp.reshape(B, N)
    t = tgt.reshape(B, N)

    vmem_cap = _vmem_capacity_bytes()
    bt, nt = _choose_tiling(B, N, x.dtype.itemsize + t.dtype.itemsize, vmem_cap)

    num_b_blocks = pl.cdiv(B, bt)
    num_n_blocks = pl.cdiv(N, nt)
    mask_cols = (N % nt) != 0

    # No input padding: edge batch blocks read OOB/garbage rows whose (garbage) NSS
    # values land in output rows >= B and are sliced away below.  Output rows are a
    # multiple of bt so no partial output blocks exist.
    out_rows = num_b_blocks * bt

    # Explicit VMEM limit derived per chip generation (leaves headroom vs capacity).
    block_in_bytes = bt * nt * (x.dtype.itemsize + t.dtype.itemsize)
    est = 2 * block_in_bytes                 # double-buffered input blocks
    est += 6 * bt * nt * 4                   # in-kernel f32 temps (cast, squares, selects)
    est += 2 * bt * 128 * 4                  # double-buffered output block
    est += 4 * max(bt, 8) * 128 * 4          # scratch accumulators (lane-padded bound)
    vmem_limit = int(min(max(est + (8 << 20), 32 << 20),
                         max(vmem_cap - (8 << 20), 32 << 20)))

    kernel = _make_nss_kernel(N, nt, mask_cols)

    out = pl.pallas_call(
        kernel,
        out_shape=jax.ShapeDtypeStruct((out_rows, 128), jnp.float32),
        grid_spec=pltpu.PrefetchScalarGridSpec(
            num_scalar_prefetch=0,
            grid=(num_b_blocks, num_n_blocks),
            in_specs=[
                pl.BlockSpec((bt, nt), lambda j, k: (j, k)),
                pl.BlockSpec((bt, nt), lambda j, k: (j, k)),
            ],
            out_specs=pl.BlockSpec((bt, 128), lambda j, k: (j, 0)),
            scratch_shapes=[
                pltpu.VMEM((bt, 1), jnp.float32),   # sum(x)
                pltpu.VMEM((bt, 1), jnp.float32),   # sum(x*x)
                pltpu.VMEM((bt, 1), jnp.float32),   # sum(x[mask])
                pltpu.VMEM((bt, 1), jnp.float32),   # count(mask)
            ],
        ),
        compiler_params=pltpu.CompilerParams(
            # batch blocks independent -> "parallel" (megacore on v7x);
            # reduction (N) axis last -> "arbitrary".
            dimension_semantics=("parallel", "arbitrary"),
            vmem_limit_bytes=vmem_limit),
    )(x, t)

    # Per-row NSS is replicated across lanes; take lane 0 of the real rows and do the
    # final batch mean in plain JAX (garbage rows >= B are discarded here — keep this slice).
    return jnp.mean(out[:B, 0])


def _reference(inp, tgt):
    """Pure-JAX reference with the exact PyTorch semantics."""
    B = inp.shape[0]
    x = inp.reshape(B, -1).astype(jnp.float32)
    t = tgt.reshape(B, -1).astype(jnp.float32)
    mean = jnp.mean(x, axis=1, keepdims=True)
    std = jnp.std(x, axis=1, keepdims=True, ddof=1)   # torch.std default: unbiased
    norm = (x - mean) / std
    mask = (t != 0).astype(jnp.float32)
    nss = jnp.mean(-1.0 * norm * mask, axis=1)
    return jnp.mean(nss)


if __name__ == "__main__":
    key = jax.random.PRNGKey(0)
    k1, k2 = jax.random.split(key)

    B, C, H, W = 2, 4, 16, 16
    inp = jax.random.normal(k1, (B, C, H, W), dtype=jnp.float32)
    # Sparse binary-ish fixation target (mostly zeros, like fixation maps).
    tgt = (jax.random.uniform(k2, (B, C, H, W)) > 0.9).astype(jnp.float32)

    out = my_norm_scan_sali(inp, tgt)
    out = jax.block_until_ready(out)

    ref = _reference(inp, tgt)
    assert jnp.allclose(out, ref, atol=1e-5, rtol=1e-5), (out, ref)

    print("KERNEL_OK")
</pallas_src>

<mosaic_0001>
module attributes {stable_mosaic.version = 11 : i64} {
  func.func @kernel(%arg0: i32, %arg1: i32, %arg2: memref<2x1024xf32, #tpu.memory_space<vmem>>, %arg3: memref<2x1024xf32, #tpu.memory_space<vmem>>, %arg4: memref<2x128xf32, #tpu.memory_space<vmem>>, %arg5: memref<2x1xf32, #tpu.memory_space<vmem>>, %arg6: memref<2x1xf32, #tpu.memory_space<vmem>>, %arg7: memref<2x1xf32, #tpu.memory_space<vmem>>, %arg8: memref<2x1xf32, #tpu.memory_space<vmem>>) attributes {dimension_semantics = [#tpu.dimension_semantics<parallel>, #tpu.dimension_semantics<arbitrary>], iteration_bounds = array<i64: 1, 1>, scalar_prefetch = 0 : i64, scratch_operands = 4 : i64, tpu.core_type = #tpu.core_type<tc>, window_params = [{transform_indices = @transform_0, window_bounds = array<i64: 2, 1024>}, {transform_indices = @transform_1, window_bounds = array<i64: 2, 1024>}, {transform_indices = @transform_2, window_bounds = array<i64: 2, 128>}]} {
    %c0_i32 = arith.constant 0 : i32
    %0 = arith.cmpi eq, %arg1, %c0_i32 : i32
    %1 = arith.extui %0 : i1 to i32
    %c0_i32_0 = arith.constant 0 : i32
    %2 = arith.cmpi ne, %1, %c0_i32_0 : i32
    scf.if %2 {
      %cst_29 = arith.constant 0.000000e+00 : f32
      %36 = vector.broadcast %cst_29 : f32 to vector<2x1xf32>
      %c0_30 = arith.constant 0 : index
      %c0_31 = arith.constant 0 : index
      %37 = vector.load %arg5[%c0_30, %c0_31] : memref<2x1xf32, #tpu.memory_space<vmem>>, vector<2x1xf32>
      tpu.vector_store %arg5[%c0_30, %c0_31], %36 {strides = array<i32>} : memref<2x1xf32, #tpu.memory_space<vmem>>, vector<2x1xf32>,
      %cst_32 = arith.constant 0.000000e+00 : f32
      %38 = vector.broadcast %cst_32 : f32 to vector<2x1xf32>
      %c0_33 = arith.constant 0 : index
      %c0_34 = arith.constant 0 : index
      %39 = vector.load %arg6[%c0_33, %c0_34] : memref<2x1xf32, #tpu.memory_space<vmem>>, vector<2x1xf32>
      tpu.vector_store %arg6[%c0_33, %c0_34], %38 {strides = array<i32>} : memref<2x1xf32, #tpu.memory_space<vmem>>, vector<2x1xf32>,
      %cst_35 = arith.constant 0.000000e+00 : f32
      %40 = vector.broadcast %cst_35 : f32 to vector<2x1xf32>
      %c0_36 = arith.constant 0 : index
      %c0_37 = arith.constant 0 : index
      %41 = vector.load %arg7[%c0_36, %c0_37] : memref<2x1xf32, #tpu.memory_space<vmem>>, vector<2x1xf32>
      tpu.vector_store %arg7[%c0_36, %c0_37], %40 {strides = array<i32>} : memref<2x1xf32, #tpu.memory_space<vmem>>, vector<2x1xf32>,
      %cst_38 = arith.constant 0.000000e+00 : f32
      %42 = vector.broadcast %cst_38 : f32 to vector<2x1xf32>
      %c0_39 = arith.constant 0 : index
      %c0_40 = arith.constant 0 : index
      %43 = vector.load %arg8[%c0_39, %c0_40] : memref<2x1xf32, #tpu.memory_space<vmem>>, vector<2x1xf32>
      tpu.vector_store %arg8[%c0_39, %c0_40], %42 {strides = array<i32>} : memref<2x1xf32, #tpu.memory_space<vmem>>, vector<2x1xf32>,
    } else {
    }
    %c0 = arith.constant 0 : index
    %c0_1 = arith.constant 0 : index
    %3 = vector.load %arg2[%c0, %c0_1] : memref<2x1024xf32, #tpu.memory_space<vmem>>, vector<2x1024xf32>
    %c0_2 = arith.constant 0 : index
    %c0_3 = arith.constant 0 : index
    %4 = vector.load %arg3[%c0_2, %c0_3] : memref<2x1024xf32, #tpu.memory_space<vmem>>, vector<2x1024xf32>
    %cst = arith.constant 0.000000e+00 : f32
    %5 = vector.broadcast %cst : f32 to vector<2x1024xf32>
    %6 = arith.cmpf one, %4, %5 : vector<2x1024xf32>
    %c0_4 = arith.constant 0 : index
    %c0_5 = arith.constant 0 : index
    %7 = vector.load %arg5[%c0_4, %c0_5] : memref<2x1xf32, #tpu.memory_space<vmem>>, vector<2x1xf32>
    %cst_6 = arith.constant dense<0.000000e+00> : vector<2xf32>
    %8 = vector.multi_reduction <add>, %3, %cst_6 [1] : vector<2x1024xf32> to vector<2xf32>
    %9 = vector.shape_cast %8 : vector<2xf32> to vector<2x1xf32>
    %10 = arith.addf %7, %9 : vector<2x1xf32>
    %c0_7 = arith.constant 0 : index
    %c0_8 = arith.constant 0 : index
    %11 = vector.load %arg5[%c0_7, %c0_8] : memref<2x1xf32, #tpu.memory_space<vmem>>, vector<2x1xf32>
    tpu.vector_store %arg5[%c0_7, %c0_8], %10 {strides = array<i32>} : memref<2x1xf32, #tpu.memory_space<vmem>>, vector<2x1xf32>,
    %c0_9 = arith.constant 0 : index
    %c0_10 = arith.constant 0 : index
    %12 = vector.load %arg6[%c0_9, %c0_10] : memref<2x1xf32, #tpu.memory_space<vmem>>, vector<2x1xf32>
    %13 = arith.mulf %3, %3 : vector<2x1024xf32>
    %cst_11 = arith.constant dense<0.000000e+00> : vector<2xf32>
    %14 = vector.multi_reduction <add>, %13, %cst_11 [1] : vector<2x1024xf32> to vector<2xf32>
    %15 = vector.shape_cast %14 : vector<2xf32> to vector<2x1xf32>
    %16 = arith.addf %12, %15 : vector<2x1xf32>
    %c0_12 = arith.constant 0 : index
    %c0_13 = arith.constant 0 : index
    %17 = vector.load %arg6[%c0_12, %c0_13] : memref<2x1xf32, #tpu.memory_space<vmem>>, vector<2x1xf32>
    tpu.vector_store %arg6[%c0_12, %c0_13], %16 {strides = array<i32>} : memref<2x1xf32, #tpu.memory_space<vmem>>, vector<2x1xf32>,
    %c0_14 = arith.constant 0 : index
    %c0_15 = arith.constant 0 : index
    %18 = vector.load %arg7[%c0_14, %c0_15] : memref<2x1xf32, #tpu.memory_space<vmem>>, vector<2x1xf32>
    %cst_16 = arith.constant 0.000000e+00 : f32
    %19 = vector.broadcast %cst_16 : f32 to vector<2x1024xf32>
    %20 = arith.select %6, %3, %19 : vector<2x1024xi1>, vector<2x1024xf32>
    %cst_17 = arith.constant dense<0.000000e+00> : vector<2xf32>
    %21 = vector.multi_reduction <add>, %20, %cst_17 [1] : vector<2x1024xf32> to vector<2xf32>
    %22 = vector.shape_cast %21 : vector<2xf32> to vector<2x1xf32>
    %23 = arith.addf %18, %22 : vector<2x1xf32>
    %c0_18 = arith.constant 0 : index
    %c0_19 = arith.constant 0 : index
    %24 = vector.load %arg7[%c0_18, %c0_19] : memref<2x1xf32, #tpu.memory_space<vmem>>, vector<2x1xf32>
    tpu.vector_store %arg7[%c0_18, %c0_19], %23 {strides = array<i32>} : memref<2x1xf32, #tpu.memory_space<vmem>>, vector<2x1xf32>,
    %c0_20 = arith.constant 0 : index
    %c0_21 = arith.constant 0 : index
    %25 = vector.load %arg8[%c0_20, %c0_21] : memref<2x1xf32, #tpu.memory_space<vmem>>, vector<2x1xf32>
    %cst_22 = arith.constant 1.000000e+00 : f32
    %cst_23 = arith.constant 0.000000e+00 : f32
    %26 = vector.broadcast %cst_22 : f32 to vector<2x1024xf32>
    %27 = vector.broadcast %cst_23 : f32 to vector<2x1024xf32>
    %28 = arith.select %6, %26, %27 : vector<2x1024xi1>, vector<2x1024xf32>
    %cst_24 = arith.constant dense<0.000000e+00> : vector<2xf32>
    %29 = vector.multi_reduction <add>, %28, %cst_24 [1] : vector<2x1024xf32> to vector<2xf32>
    %30 = vector.shape_cast %29 : vector<2xf32> to vector<2x1xf32>
    %31 = arith.addf %25, %30 : vector<2x1xf32>
    %c0_25 = arith.constant 0 : index
    %c0_26 = arith.constant 0 : index
    %32 = vector.load %arg8[%c0_25, %c0_26] : memref<2x1xf32, #tpu.memory_space<vmem>>, vector<2x1xf32>
    tpu.vector_store %arg8[%c0_25, %c0_26], %31 {strides = array<i32>} : memref<2x1xf32, #tpu.memory_space<vmem>>, vector<2x1xf32>,
    %c0_i32_27 = arith.constant 0 : i32
    %33 = arith.cmpi eq, %arg1, %c0_i32_27 : i32
    %34 = arith.extui %33 : i1 to i32
    %c0_i32_28 = arith.constant 0 : i32
    %35 = arith.cmpi ne, %34, %c0_i32_28 : i32
    scf.if %35 {
      %c0_29 = arith.constant 0 : index
      %c0_30 = arith.constant 0 : index
      %36 = vector.load %arg5[%c0_29, %c0_30] : memref<2x1xf32, #tpu.memory_space<vmem>>, vector<2x1xf32>
      %cst_31 = arith.constant 9.765625E-4 : f32
      %37 = vector.broadcast %cst_31 : f32 to vector<2x1xf32>
      %38 = arith.mulf %36, %37 : vector<2x1xf32>
      %c0_32 = arith.constant 0 : index
      %c0_33 = arith.constant 0 : index
      %39 = vector.load %arg6[%c0_32, %c0_33] : memref<2x1xf32, #tpu.memory_space<vmem>>, vector<2x1xf32>
      %40 = arith.mulf %38, %36 : vector<2x1xf32>
      %41 = arith.subf %39, %40 : vector<2x1xf32>
      %cst_34 = arith.constant 9.77517105E-4 : f32
      %42 = vector.broadcast %cst_34 : f32 to vector<2x1xf32>
      %43 = arith.mulf %41, %42 : vector<2x1xf32>
      %44 = math.rsqrt %43 : vector<2x1xf32>
      %c0_35 = arith.constant 0 : index
      %c0_36 = arith.constant 0 : index
      %45 = vector.load %arg7[%c0_35, %c0_36] : memref<2x1xf32, #tpu.memory_space<vmem>>, vector<2x1xf32>
      %c0_37 = arith.constant 0 : index
      %c0_38 = arith.constant 0 : index
      %46 = vector.load %arg8[%c0_37, %c0_38] : memref<2x1xf32, #tpu.memory_space<vmem>>, vector<2x1xf32>
      %47 = arith.mulf %38, %46 : vector<2x1xf32>
      %48 = arith.subf %45, %47 : vector<2x1xf32>
      %cst_39 = arith.constant -9.765625E-4 : f32
      %49 = vector.broadcast %cst_39 : f32 to vector<2x1xf32>
      %50 = arith.mulf %49, %44 : vector<2x1xf32>
      %51 = arith.mulf %50, %48 : vector<2x1xf32>
      %52 = vector.shape_cast %51 : vector<2x1xf32> to vector<2x1xf32>
      %53 = vector.broadcast %52 : vector<2x1xf32> to vector<2x128xf32>
      %c0_40 = arith.constant 0 : index
      %c0_41 = arith.constant 0 : index
      %54 = vector.load %arg4[%c0_40, %c0_41] : memref<2x128xf32, #tpu.memory_space<vmem>>, vector<2x128xf32>
      tpu.vector_store %arg4[%c0_40, %c0_41], %53 {strides = array<i32>} : memref<2x128xf32, #tpu.memory_space<vmem>>, vector<2x128xf32>,
    } else {
    }
    return
  }
  func.func @transform_0(%arg0: i32, %arg1: i32) -> (i32, i32) {
    %c0_i32 = arith.constant 0 : i32
    return %arg0, %arg1 : i32, i32
  }
  func.func @transform_1(%arg0: i32, %arg1: i32) -> (i32, i32) {
    %c0_i32 = arith.constant 0 : i32
    return %arg0, %arg1 : i32, i32
  }
  func.func @transform_2(%arg0: i32, %arg1: i32) -> (i32, i32) {
    %c0_i32 = arith.constant 0 : i32
    %c0_i32_0 = arith.constant 0 : i32
    return %arg0, %c0_i32 : i32, i32
  }
}

</mosaic_0001>

<llo_original>
// kernel: tpu_custom_call.1
$region0: #{tpu_custom_call.1}
  #allocation0 [shape = 'u32[]', space=smem, size = 0x4, offset = 0x4, fixed_abs, tag = 'smem constant byte address 0x4 - core index']
  #allocation1 [shape = 'u32[72,128]{1,0:T(1,128)}', space=vmem, size = 0x9000, scoped, tag = 'internal scratch']
  #allocation2 [shape = 'f32[2,1]{1,0:T(2,128)}', space=vmem, size = 0x400, scoped, tag = 'scratch operand']
  #allocation3 [shape = 'f32[2,1]{1,0:T(2,128)}', space=vmem, size = 0x400, scoped, tag = 'scratch operand']
  #allocation4 [shape = 'f32[2,1]{1,0:T(2,128)}', space=vmem, size = 0x400, scoped, tag = 'scratch operand']
  #allocation5 [shape = 'f32[2,1]{1,0:T(2,128)}', space=vmem, size = 0x400, scoped, tag = 'scratch operand']
  %s0 = inlined_call_operand.hbm [shape: f32[2,1024], index: 0, kind: input, shape index: {}]
  %s1 = inlined_call_operand.hbm [shape: f32[2,1024], index: 1, kind: input, shape index: {}]
  %s2 = inlined_call_operand.hbm [shape: f32[2,128], index: 2, kind: output, shape index: {}]
  %s3 = sld [smem:[#allocation0]]
  $region34: #{tpu_custom_call.1} parent=0
    _
  %s5 = ssub.s32 1, %s3
  %s6 = scalar_select 0, %s5, %s3
  $region1: #{tpu_custom_call.1} parent=0
    #allocation6 [shape = 'u8[8192]{0}', space=vmem, size = 0x2000, scoped, tag = 'input window, operand 0, single buffered']
    #allocation7 [shape = 's32[1]{0}', space=sflag, size = 0x4, scoped, tag = 'scoped memory for tpu_custom_call.1']
    #allocation8 [shape = 's32[1]{0}', space=sflag, size = 0x4, scoped, tag = 'scoped memory for tpu_custom_call.1']
    #allocation9 [shape = 'u8[8192]{0}', space=vmem, size = 0x2000, scoped, tag = 'input window, operand 1, single buffered']
    #allocation10 [shape = 's32[1]{0}', space=sflag, size = 0x4, scoped, tag = 'scoped memory for tpu_custom_call.1']
    #allocation11 [shape = 'u8[1024]{0}', space=vmem, size = 0x400, scoped, tag = 'output window, operand 0, single buffered']
    %7 = vsyncpa [#allocation7], 0
    %8 = vsyncpa [#allocation10], 0
    %9 = vsyncpa [#allocation8], 0
    // Predicated region
    $region2: #{tpu_custom_call.1} parent=1 // pred_check
      _
    $region3: #{tpu_custom_call.1} parent=1 // pred_check_branch
      %11 = sbr.rel (0) target = $region5
    $region4: #{tpu_custom_call.1} parent=1 // pred_region
      %13 = vsyncadd [#allocation7], 0
      %s15 = sshll.u32 %s0, 4
      %s16 = int_to_ptr.hbm [resolvable:$true] %s15
      %s17 = sshll.u32 [#allocation6], 4
      %s18 = int_to_ptr.vmem [resolvable:$true] %s17
      %20 = dma.hbm_to_vmem [thread:$0]  %s16, 256, %s18, [#allocation7]
    $region5: #{tpu_custom_call.1} parent=1 // pred_fallthru
      _
    // Predicated region
    $region6: #{tpu_custom_call.1} parent=1 // pred_check
      _
    $region7: #{tpu_custom_call.1} parent=1 // pred_check_branch
      %22 = sbr.rel (0) target = $region9
    $region8: #{tpu_custom_call.1} parent=1 // pred_region
      %24 = vsyncadd [#allocation10], 0
      %s26 = sshll.u32 %s1, 4
      %s27 = int_to_ptr.hbm [resolvable:$true] %s26
      %s28 = sshll.u32 [#allocation9], 4
      %s29 = int_to_ptr.vmem [resolvable:$true] %s28
      %31 = dma.hbm_to_vmem [thread:$0]  %s27, 256, %s29, [#allocation10]
    $region9: #{tpu_custom_call.1} parent=1 // pred_fallthru
      _
    // Predicated region
    $region10: #{tpu_custom_call.1} parent=1 // pred_check
      _
    $region11: #{tpu_custom_call.1} parent=1 // pred_check_branch
      %33 = sbr.rel (0) target = $region13
    $region12: #{tpu_custom_call.1} parent=1 // pred_region
      %35 = dma.done [#allocation7], 256
    $region13: #{tpu_custom_call.1} parent=1 // pred_fallthru
      _
    // Predicated region
    $region14: #{tpu_custom_call.1} parent=1 // pred_check
      _
    $region15: #{tpu_custom_call.1} parent=1 // pred_check_branch
      %37 = sbr.rel (0) target = $region17
    $region16: #{tpu_custom_call.1} parent=1 // pred_region
      %39 = dma.done [#allocation10], 256
    $region17: #{tpu_custom_call.1} parent=1 // pred_fallthru
      _
    %p40 = scmp.eq.s32.totalorder 0, 0
    // Predicated region
    $region18: #{tpu_custom_call.1} parent=1 // pred_check
      %p41 = pneg %p40
    $region19: #{tpu_custom_call.1} parent=1 // pred_check_branch
      %43 = sbr.rel (%p41) target = $region21
    $region20: #{tpu_custom_call.1} parent=1 // pred_region
      %vm44 = vcmask 1024
      %45 = vst.msk [vmem:[#allocation2] sm:$0x3] %vm44, 0.0
      %46 = vst.msk [vmem:[#allocation3] sm:$0x3] %vm44, 0.0
      %47 = vst.msk [vmem:[#allocation4] sm:$0x3] %vm44, 0.0
      %48 = vst.msk [vmem:[#allocation5] sm:$0x3] %vm44, 0.0
    $region21: #{tpu_custom_call.1} parent=1 // pred_fallthru
      _
    %v49 = vld [vmem:[#allocation6] sm:$0xff]
    %v50 = vld [vmem:[#allocation6 + $0x8] sm:$0xff]
    %v51 = vld [vmem:[#allocation9] sm:$0xff]
    %v52 = vld [vmem:[#allocation9 + $0x8] sm:$0xff]
    %vm53 = vcmp.ne.f32.partialorder %v51, 0.0
    %vm54 = vcmp.ne.f32.partialorder %v52, 0.0
    %v55 = vld [vmem:[#allocation2] sm:$0x3]
    %58 = vst [vmem:[#allocation1] ss:$4 sm:$0xff] %v49
    %s59 = scalar_lea.vmem [#allocation1], 32
    %60 = vst [vmem:[%s59] ss:$4 sm:$0xff] %v50
    %v61 = vld.sshfl [vmem:[#allocation1] sm:$0xff pattern:$0x73625140]
    %v62 = vld.sshfl [vmem:[#allocation1 + $0x8] sm:$0xff pattern:$0x73625140]
    %v63 = vld.sshfl [vmem:[#allocation1 + $0x10] sm:$0xff pattern:$0x73625140]
    %v64 = vld.sshfl [vmem:[#allocation1 + $0x18] sm:$0xff pattern:$0x73625140]
    %v65 = vld.sshfl [vmem:[#allocation1 + $0x20] sm:$0xff pattern:$0x73625140]
    %v66 = vld.sshfl [vmem:[#allocation1 + $0x28] sm:$0xff pattern:$0x73625140]
    %v67 = vld.sshfl [vmem:[#allocation1 + $0x30] sm:$0xff pattern:$0x73625140]
    %v68 = vld.sshfl [vmem:[#allocation1 + $0x38] sm:$0xff pattern:$0x73625140]
    %vm77 = vcmask 1041408
    %v78 = vsel %vm77, %v61, 0.0
    %v79 = vsel %vm77, %v62, 0.0
    %v80 = vadd.f32 %v78, %v79
    %v81 = vsel %vm77, %v63, 0.0
    %v82 = vadd.f32 %v80, %v81
    %v83 = vsel %vm77, %v64, 0.0
    %v84 = vadd.f32 %v82, %v83
    %v85 = vsel %vm77, %v65, 0.0
    %v86 = vadd.f32 %v84, %v85
    %v87 = vsel %vm77, %v66, 0.0
    %v88 = vadd.f32 %v86, %v87
    %v89 = vsel %vm77, %v67, 0.0
    %v90 = vadd.f32 %v88, %v89
    %v91 = vsel %vm77, %v68, 0.0
    %v92 = vadd.f32 %v90, %v91
    %93 = vadd.xlane.f32.xlu0 %v92
    %v94 = vpop.xlane.xlu0 %93
    %v95 = vadd.f32 %v55, %v94
    %vm96 = vcmask 1024
    %97 = vst.msk [vmem:[#allocation2] sm:$0x3] %vm96, %v95
    %v98 = vld [vmem:[#allocation3] sm:$0x3]
    %v99 = vmul.f32 %v49, %v49
    %v100 = vmul.f32 %v50, %v50
    %103 = vst [vmem:[#allocation1] ss:$4 sm:$0xff] %v99
    %s104 = scalar_lea.vmem [#allocation1], 32
    %105 = vst [vmem:[%s104] ss:$4 sm:$0xff] %v100
    %v106 = vld.sshfl [vmem:[#allocation1] sm:$0xff pattern:$0x73625140]
    %v107 = vld.sshfl [vmem:[#allocation1 + $0x8] sm:$0xff pattern:$0x73625140]
    %v108 = vld.sshfl [vmem:[#allocation1 + $0x10] sm:$0xff pattern:$0x73625140]
    %v109 = vld.sshfl [vmem:[#allocation1 + $0x18] sm:$0xff pattern:$0x73625140]
    %v110 = vld.sshfl [vmem:[#allocation1 + $0x20] sm:$0xff pattern:$0x73625140]
    %v111 = vld.sshfl [vmem:[#allocation1 + $0x28] sm:$0xff pattern:$0x73625140]
    %v112 = vld.sshfl [vmem:[#allocation1 + $0x30] sm:$0xff pattern:$0x73625140]
    %v113 = vld.sshfl [vmem:[#allocation1 + $0x38] sm:$0xff pattern:$0x73625140]
    %v122 = vsel %vm77, %v106, 0.0
    %v123 = vsel %vm77, %v107, 0.0
    %v124 = vadd.f32 %v122, %v123
    %v125 = vsel %vm77, %v108, 0.0
    %v126 = vadd.f32 %v124, %v125
    %v127 = vsel %vm77, %v109, 0.0
    %v128 = vadd.f32 %v126, %v127
    %v129 = vsel %vm77, %v110, 0.0
    %v130 = vadd.f32 %v128, %v129
    %v131 = vsel %vm77, %v111, 0.0
    %v132 = vadd.f32 %v130, %v131
    %v133 = vsel %vm77, %v112, 0.0
    %v134 = vadd.f32 %v132, %v133
    %v135 = vsel %vm77, %v113, 0.0
    %v136 = vadd.f32 %v134, %v135
    %137 = vadd.xlane.f32.xlu0 %v136
    %v138 = vpop.xlane.xlu0 %137
    %v139 = vadd.f32 %v98, %v138
    %140 = vst.msk [vmem:[#allocation3] sm:$0x3] %vm96, %v139
    %v141 = vld [vmem:[#allocation4] sm:$0x3]
    %v142 = vsel %vm53, %v49, 0.0
    %v143 = vsel %vm54, %v50, 0.0
    %146 = vst [vmem:[#allocation1] ss:$4 sm:$0xff] %v142
    %s147 = scalar_lea.vmem [#allocation1], 32
    %148 = vst [vmem:[%s147] ss:$4 sm:$0xff] %v143
    %v149 = vld.sshfl [vmem:[#allocation1] sm:$0xff pattern:$0x73625140]
    %v150 = vld.sshfl [vmem:[#allocation1 + $0x8] sm:$0xff pattern:$0x73625140]
    %v151 = vld.sshfl [vmem:[#allocation1 + $0x10] sm:$0xff pattern:$0x73625140]
    %v152 = vld.sshfl [vmem:[#allocation1 + $0x18] sm:$0xff pattern:$0x73625140]
    %v153 = vld.sshfl [vmem:[#allocation1 + $0x20] sm:$0xff pattern:$0x73625140]
    %v154 = vld.sshfl [vmem:[#allocation1 + $0x28] sm:$0xff pattern:$0x73625140]
    %v155 = vld.sshfl [vmem:[#allocation1 + $0x30] sm:$0xff pattern:$0x73625140]
    %v156 = vld.sshfl [vmem:[#allocation1 + $0x38] sm:$0xff pattern:$0x73625140]
    %v165 = vsel %vm77, %v149, 0.0
    %v166 = vsel %vm77, %v150, 0.0
    %v167 = vadd.f32 %v165, %v166
    %v168 = vsel %vm77, %v151, 0.0
    %v169 = vadd.f32 %v167, %v168
    %v170 = vsel %vm77, %v152, 0.0
    %v171 = vadd.f32 %v169, %v170
    %v172 = vsel %vm77, %v153, 0.0
    %v173 = vadd.f32 %v171, %v172
    %v174 = vsel %vm77, %v154, 0.0
    %v175 = vadd.f32 %v173, %v174
    %v176 = vsel %vm77, %v155, 0.0
    %v177 = vadd.f32 %v175, %v176
    %v178 = vsel %vm77, %v156, 0.0
    %v179 = vadd.f32 %v177, %v178
    %180 = vadd.xlane.f32.xlu0 %v179
    %v181 = vpop.xlane.xlu0 %180
    %v182 = vadd.f32 %v141, %v181
    %183 = vst.msk [vmem:[#allocation4] sm:$0x3] %vm96, %v182
    %v184 = vld [vmem:[#allocation5] sm:$0x3]
    %v185 = vsel %vm53, 1.0, 0.0
    %v186 = vsel %vm54, 1.0, 0.0
    %189 = vst [vmem:[#allocation1] ss:$4 sm:$0xff] %v185
    %s190 = scalar_lea.vmem [#allocation1], 32
    %191 = vst [vmem:[%s190] ss:$4 sm:$0xff] %v186
    %v192 = vld.sshfl [vmem:[#allocation1] sm:$0xff pattern:$0x73625140]
    %v193 = vld.sshfl [vmem:[#allocation1 + $0x8] sm:$0xff pattern:$0x73625140]
    %v194 = vld.sshfl [vmem:[#allocation1 + $0x10] sm:$0xff pattern:$0x73625140]
    %v195 = vld.sshfl [vmem:[#allocation1 + $0x18] sm:$0xff pattern:$0x73625140]
    %v196 = vld.sshfl [vmem:[#allocation1 + $0x20] sm:$0xff pattern:$0x73625140]
    %v197 = vld.sshfl [vmem:[#allocation1 + $0x28] sm:$0xff pattern:$0x73625140]
    %v198 = vld.sshfl [vmem:[#allocation1 + $0x30] sm:$0xff pattern:$0x73625140]
    %v199 = vld.sshfl [vmem:[#allocation1 + $0x38] sm:$0xff pattern:$0x73625140]
    %v208 = vsel %vm77, %v192, 0.0
    %v209 = vsel %vm77, %v193, 0.0
    %v210 = vadd.f32 %v208, %v209
    %v211 = vsel %vm77, %v194, 0.0
    %v212 = vadd.f32 %v210, %v211
    %v213 = vsel %vm77, %v195, 0.0
    %v214 = vadd.f32 %v212, %v213
    %v215 = vsel %vm77, %v196, 0.0
    %v216 = vadd.f32 %v214, %v215
    %v217 = vsel %vm77, %v197, 0.0
    %v218 = vadd.f32 %v216, %v217
    %v219 = vsel %vm77, %v198, 0.0
    %v220 = vadd.f32 %v218, %v219
    %v221 = vsel %vm77, %v199, 0.0
    %v222 = vadd.f32 %v220, %v221
    %223 = vadd.xlane.f32.xlu0 %v222
    %v224 = vpop.xlane.xlu0 %223
    %v225 = vadd.f32 %v184, %v224
    %226 = vst.msk [vmem:[#allocation5] sm:$0x3] %vm96, %v225
    // Predicated region
    $region22: #{tpu_custom_call.1} parent=1 // pred_check
      %p227 = pneg %p40
    $region23: #{tpu_custom_call.1} parent=1 // pred_check_branch
      %229 = sbr.rel (%p227) target = $region25
    $region24: #{tpu_custom_call.1} parent=1 // pred_region
      %v230 = vld [vmem:[#allocation2] sm:$0x3]
      %v231 = vmul.f32 %v230, 0.0009765625
      %v232 = vld [vmem:[#allocation3] sm:$0x3]
      %v233 = vmul.f32 %v231, %v230
      %v234 = vsub.f32 %v232, %v233
      %v235 = vmul.f32 %v234, 0.0009775171
      %v236 = vrsqrt.pop %v235
      %v237 = vmul.f32 %v236, %v235
      %v238 = vmul.f32 %v237, %v236
      %v239 = vmul.f32 0.5, %v238
      %v240 = vsub.f32 1.5, %v239
      %v241 = vmul.f32 %v236, %v240
      %vm242 = vweird.f32 %v235
      %vm243 = vweird.f32 %v236
      %vm244 = vmor %vm242, %vm243
      %v245 = vsel %vm244, %v236, %v241
      %v246 = vld [vmem:[#allocation4] sm:$0x3]
      %v247 = vld [vmem:[#allocation5] sm:$0x3]
      %v248 = vmul.f32 %v231, %v247
      %v249 = vsub.f32 %v246, %v248
      %v250 = vmul.f32 %v245, -0.0009765625
      %v251 = vmul.f32 %v250, %v249
      %253 = vset.pattern.permute.xlu0 0
      %254 = vperm.xlu0 %253, %v251
      %v255 = vpop.permute.xlu0 %254
      %257 = vst [vmem:[#allocation11] sm:$0x3] %v255
    $region25: #{tpu_custom_call.1} parent=1 // pred_fallthru
      _
    // Predicated region
    $region26: #{tpu_custom_call.1} parent=1 // pred_check
      _
    $region27: #{tpu_custom_call.1} parent=1 // pred_check_branch
      %259 = sbr.rel (0) target = $region29
    $region28: #{tpu_custom_call.1} parent=1 // pred_region
      %261 = vsyncadd [#allocation8], 0
      %s263 = sshll.u32 [#allocation11], 4
      %s264 = int_to_ptr.vmem [resolvable:$true] %s263
      %s265 = sshll.u32 %s2, 4
      %s266 = int_to_ptr.hbm [resolvable:$true] %s265
      %268 = dma.vmem_to_hbm [thread:$0]  %s264, 32, %s266, [#allocation8]
    $region29: #{tpu_custom_call.1} parent=1 // pred_fallthru
      _
    // Predicated region
    $region30: #{tpu_custom_call.1} parent=1 // pred_check
      _
    $region31: #{tpu_custom_call.1} parent=1 // pred_check_branch
      %270 = sbr.rel (0) target = $region33
    $region32: #{tpu_custom_call.1} parent=1 // pred_region
      %272 = dma.done [#allocation8], 32
    $region33: #{tpu_custom_call.1} parent=1 // pred_fallthru
      _
    %273 = vsyncpa [#allocation7], 1
    %274 = vsyncpa [#allocation10], 1
    %275 = vsyncpa [#allocation8], 1

</llo_original>
